<compile_context>
chip_gen: v5e
topology: v5e:2x2
jax: 0.10.0
libtpu: 0.0.40
codegen_flags: <defaults>
</compile_context>

<pallas_src>
import functools

import jax
import jax.numpy as jnp
from jax import lax
from jax.experimental import pallas as pl
from jax.experimental.pallas import tpu as pltpu


def _cosine_distance_kernel(x1_ref, x2_ref, o_ref, *, eps):
    # x1_ref, x2_ref: (C, TM) tiles; o_ref: (1, TM)
    x1 = x1_ref[...]
    x2 = x2_ref[...]
    # Promote only when needed (keeps the DMA at input width; fp32 is a no-op).
    if x1.dtype != jnp.float32:
        x1 = x1.astype(jnp.float32)
    if x2.dtype != jnp.float32:
        x2 = x2.astype(jnp.float32)

    dot = jnp.sum(x1 * x2, axis=0, keepdims=True)   # (1, TM)
    n1 = jnp.sum(x1 * x1, axis=0, keepdims=True)    # (1, TM)
    n2 = jnp.sum(x2 * x2, axis=0, keepdims=True)    # (1, TM)

    # One rsqrt (EUP) instead of two sqrts + a divide; clamp the product of
    # squared norms at eps^2 like torch does.
    eps32 = jnp.float32(eps)
    inv = lax.rsqrt(jnp.maximum(n1 * n2, eps32 * eps32))
    o_ref[...] = (1.0 - dot * inv).astype(o_ref.dtype)


def cosine_distance(x1, x2, *, dim=1, eps=1e-8, tile_m=None):
    """1 - cosine_similarity(x1, x2, dim=1, eps) for NCHW inputs."""
    assert dim == 1, "kernel implemented for dim=1 (channel axis of NCHW)"
    assert x1.shape == x2.shape and x1.dtype == x2.dtype
    N, C, H, W = x1.shape
    HW = H * W
    itemsize = jnp.dtype(x1.dtype).itemsize

    # NCHW -> (N, C, H*W): layout-preserving reshape, no HBM transpose/copy.
    x1r = x1.reshape(N, C, HW)
    x2r = x2.reshape(N, C, HW)

    if tile_m is None:
        # ~2 MiB per input block: large DMAs for HBM efficiency, small enough
        # that double-buffered inputs + fp32 temporaries fit v7x's 64 MiB VMEM.
        target_block_bytes = 2 << 20
        tile_m = max(512, target_block_bytes // max(C * itemsize, 1))
    tile_m = max(128, (tile_m // 128) * 128)
    # Never tile wider than the (lane-padded) spatial extent.
    tile_m = min(tile_m, pl.cdiv(HW, 128) * 128)

    grid = (N, pl.cdiv(HW, tile_m))

    out = pl.pallas_call(
        functools.partial(_cosine_distance_kernel, eps=eps),
        out_shape=jax.ShapeDtypeStruct((N, 1, HW), x1.dtype),
        grid_spec=pltpu.PrefetchScalarGridSpec(
            num_scalar_prefetch=0,
            grid=grid,
            in_specs=[
                pl.BlockSpec((pl.Squeezed(), C, tile_m), lambda n, i: (n, 0, i)),
                pl.BlockSpec((pl.Squeezed(), C, tile_m), lambda n, i: (n, 0, i)),
            ],
            out_specs=pl.BlockSpec(
                (pl.Squeezed(), 1, tile_m), lambda n, i: (n, 0, i)
            ),
        ),
        compiler_params=pltpu.CompilerParams(
            dimension_semantics=("parallel", "parallel"),
            vmem_limit_bytes=64 << 20,
        ),
        cost_estimate=pl.CostEstimate(
            flops=6 * N * C * HW,
            transcendentals=N * HW,
            bytes_accessed=2 * N * C * HW * itemsize + N * HW * itemsize,
        ),
    )(x1r, x2r)

    return out.reshape(N, H, W)


def _reference(x1, x2, eps=1e-8):
    dot = jnp.sum(x1 * x2, axis=1)
    n1 = jnp.sqrt(jnp.sum(x1 * x1, axis=1))
    n2 = jnp.sqrt(jnp.sum(x2 * x2, axis=1))
    return 1.0 - dot / jnp.maximum(n1 * n2, eps)


if __name__ == "__main__":
    key = jax.random.PRNGKey(0)
    k1, k2 = jax.random.split(key)
    N, C, H, W = 2, 4, 16, 16
    x1 = jax.random.normal(k1, (N, C, H, W), dtype=jnp.float32)
    x2 = jax.random.normal(k2, (N, C, H, W), dtype=jnp.float32)

    out = cosine_distance(x1, x2, dim=1, eps=1e-8)
    out = jax.block_until_ready(out)

    ref = _reference(x1, x2)
    assert out.shape == (N, H, W), out.shape
    assert jnp.allclose(out, ref, atol=1e-5, rtol=1e-5), "mismatch vs reference"
    print("KERNEL_OK")
</pallas_src>

<mosaic_0001>
module attributes {stable_mosaic.version = 11 : i64} {
  func.func @_cosine_distance_kernel(%arg0: i32, %arg1: i32, %arg2: memref<1x4x256xf32, #tpu.memory_space<vmem>>, %arg3: memref<1x4x256xf32, #tpu.memory_space<vmem>>, %arg4: memref<1x1x256xf32, #tpu.memory_space<vmem>>) attributes {dimension_semantics = [#tpu.dimension_semantics<parallel>, #tpu.dimension_semantics<parallel>], iteration_bounds = array<i64: 2, 1>, scalar_prefetch = 0 : i64, scratch_operands = 0 : i64, tpu.core_type = #tpu.core_type<tc>, window_params = [{transform_indices = @transform_0, window_bounds = array<i64: 1, 4, 256>}, {transform_indices = @transform_1, window_bounds = array<i64: 1, 4, 256>}, {transform_indices = @transform_2, window_bounds = array<i64: 1, 1, 256>}]} {
    %c0 = arith.constant 0 : index
    %c0_0 = arith.constant 0 : index
    %c0_1 = arith.constant 0 : index
    %0 = vector.load %arg2[%c0, %c0_0, %c0_1] : memref<1x4x256xf32, #tpu.memory_space<vmem>>, vector<1x4x256xf32>
    %1 = vector.shape_cast %0 : vector<1x4x256xf32> to vector<4x256xf32>
    %c0_2 = arith.constant 0 : index
    %c0_3 = arith.constant 0 : index
    %c0_4 = arith.constant 0 : index
    %2 = vector.load %arg3[%c0_2, %c0_3, %c0_4] : memref<1x4x256xf32, #tpu.memory_space<vmem>>, vector<1x4x256xf32>
    %3 = vector.shape_cast %2 : vector<1x4x256xf32> to vector<4x256xf32>
    %4 = arith.mulf %1, %3 : vector<4x256xf32>
    %cst = arith.constant dense<0.000000e+00> : vector<256xf32>
    %5 = vector.multi_reduction <add>, %4, %cst [0] : vector<4x256xf32> to vector<256xf32>
    %6 = vector.shape_cast %5 : vector<256xf32> to vector<1x256xf32>
    %7 = arith.mulf %1, %1 : vector<4x256xf32>
    %cst_5 = arith.constant dense<0.000000e+00> : vector<256xf32>
    %8 = vector.multi_reduction <add>, %7, %cst_5 [0] : vector<4x256xf32> to vector<256xf32>
    %9 = vector.shape_cast %8 : vector<256xf32> to vector<1x256xf32>
    %10 = arith.mulf %3, %3 : vector<4x256xf32>
    %cst_6 = arith.constant dense<0.000000e+00> : vector<256xf32>
    %11 = vector.multi_reduction <add>, %10, %cst_6 [0] : vector<4x256xf32> to vector<256xf32>
    %12 = vector.shape_cast %11 : vector<256xf32> to vector<1x256xf32>
    %13 = arith.mulf %9, %12 : vector<1x256xf32>
    %cst_7 = arith.constant 9.99999993E-9 : f32
    %cst_8 = arith.constant 9.99999993E-9 : f32
    %14 = arith.mulf %cst_7, %cst_8 : f32
    %15 = vector.broadcast %14 : f32 to vector<1x256xf32>
    %16 = arith.maximumf %13, %15 : vector<1x256xf32>
    %17 = math.rsqrt %16 : vector<1x256xf32>
    %18 = arith.mulf %6, %17 : vector<1x256xf32>
    %cst_9 = arith.constant 1.000000e+00 : f32
    %19 = vector.broadcast %cst_9 : f32 to vector<1x256xf32>
    %20 = arith.subf %19, %18 : vector<1x256xf32>
    %c0_10 = arith.constant 0 : index
    %c0_11 = arith.constant 0 : index
    %c0_12 = arith.constant 0 : index
    %21 = vector.load %arg4[%c0_10, %c0_11, %c0_12] : memref<1x1x256xf32, #tpu.memory_space<vmem>>, vector<1x1x256xf32>
    %22 = vector.shape_cast %21 : vector<1x1x256xf32> to vector<1x256xf32>
    %23 = vector.shape_cast %20 : vector<1x256xf32> to vector<1x1x256xf32>
    tpu.vector_store %arg4[%c0_10, %c0_11, %c0_12], %23 {strides = array<i32>} : memref<1x1x256xf32, #tpu.memory_space<vmem>>, vector<1x1x256xf32>,
    return
  }
  func.func @transform_0(%arg0: i32, %arg1: i32) -> (i32, i32, i32) {
    %c0_i32 = arith.constant 0 : i32
    %c0_i32_0 = arith.constant 0 : i32
    return %arg0, %c0_i32, %arg1 : i32, i32, i32
  }
  func.func @transform_1(%arg0: i32, %arg1: i32) -> (i32, i32, i32) {
    %c0_i32 = arith.constant 0 : i32
    %c0_i32_0 = arith.constant 0 : i32
    return %arg0, %c0_i32, %arg1 : i32, i32, i32
  }
  func.func @transform_2(%arg0: i32, %arg1: i32) -> (i32, i32, i32) {
    %c0_i32 = arith.constant 0 : i32
    %c0_i32_0 = arith.constant 0 : i32
    return %arg0, %c0_i32, %arg1 : i32, i32, i32
  }
}

</mosaic_0001>

<llo_original>
// kernel: tpu_custom_call.1
$region0: #{tpu_custom_call.1}
  #allocation0 [shape = 'u32[]', space=smem, size = 0x4, offset = 0x4, fixed_abs, tag = 'smem constant byte address 0x4 - core index']
  #allocation1 [shape = 'u32[72,128]{1,0:T(1,128)}', space=vmem, size = 0x9000, scoped, tag = 'internal scratch']
  %s0 = inlined_call_operand.hbm [shape: f32[2,4,256], index: 0, kind: input, shape index: {}]
  %s1 = inlined_call_operand.hbm [shape: f32[2,4,256], index: 1, kind: input, shape index: {}]
  %s2 = inlined_call_operand.hbm [shape: f32[2,1,256], index: 2, kind: output, shape index: {}]
  %s3 = sld [smem:[#allocation0]]
  $region49: #{tpu_custom_call.1} parent=0
    _
  %s5 = ssub.s32 1, %s3
  %s6 = scalar_select 0, %s5, %s3
  $region1: #{tpu_custom_call.1} parent=0
    #allocation2 [shape = 'u8[8192]{0}', space=vmem, size = 0x2000, scoped, tag = 'input window, operand 0']
    #allocation3 [shape = 's32[2]{0}', space=sflag, size = 0x8, scoped, tag = 'scoped memory for tpu_custom_call.1']
    #allocation4 [shape = 's32[2]{0}', space=sflag, size = 0x8, scoped, tag = 'scoped memory for tpu_custom_call.1']
    #allocation5 [shape = 'u8[8192]{0}', space=vmem, size = 0x2000, scoped, tag = 'input window, operand 1']
    #allocation6 [shape = 's32[2]{0}', space=sflag, size = 0x8, scoped, tag = 'scoped memory for tpu_custom_call.1']
    #allocation7 [shape = 'u8[2048]{0}', space=vmem, size = 0x800, scoped, tag = 'output window, operand 0']
    %7 = vsyncpa [#allocation3], 0
    %s8 = scalar_lea.sflag [#allocation3], 1
    %9 = vsyncpa %s8, 0
    %10 = vsyncpa [#allocation6], 0
    %s11 = scalar_lea.sflag [#allocation6], 1
    %12 = vsyncpa %s11, 0
    %13 = vsyncpa [#allocation4], 0
    %s14 = scalar_lea.sflag [#allocation4], 1
    %15 = vsyncpa %s14, 0
    loop: start=0, step=1, limit=4
    $region2: #{tpu_custom_call.1} parent=1 // loop_pre_header
      _
    $region3: #{tpu_custom_call.1} parent=1 // loop_header
      %s17 = sphi 0, %s21
      %p18 = scmp.ge.s32.totalorder %s17, 4
      %s24 = sphi 0, %s36
      %s25 = sphi 0, %s32
      %s26 = sphi 0, %s24
      %s27 = sphi 0, %s25
      %s28 = sphi 0, %s26
      %s29 = sphi 0, %s27
      %s41 = sphi 0, %s43
      %s44 = sphi 0, %s41
      %s45 = sphi 0, %s44
      %s61 = sphi 0, %s45
      %s69 = sphi 0, %s71
      %s72 = sphi 0, %s69
      %s73 = sphi 0, %s72
      %s89 = sphi 0, %s73
      %s97 = sphi 0, %s99
      %s100 = sphi 0, %s97
      %s101 = sphi 0, %s100
      %s117 = sphi 0, %s101
    $region4: #{tpu_custom_call.1} parent=1 // loop_header_branch
      %20 = sbr.rel (%p18) target = $region8
    $region5: #{tpu_custom_call.1} parent=1 // loop_body
      %s22 = ssub.s32 %s17, 1
      %s23 = ssub.s32 %s17, 2
      %s30 = sadd.s32 1, %s25
      %p31 = scmp.ge.s32.totalorder %s30, 1
      %s32 = scalar_select %p31, 0, %s30
      %s33 = sadd.s32 1, %s24
      %s34 = scalar_select %p31, %s33, %s24
      %p35 = scmp.ge.s32.totalorder %s34, 2
      %s36 = scalar_select %p35, 0, %s34
      %s37 = ssub.s32 %s24, %s36
      %s38 = ssub.s32 %s25, %s32
      %s39 = sor.u32 %s37, %s38
      %p40 = scmp.eq.s32.totalorder %s39, 0
      %s42 = sadd.s32 %s41, 1
      %s43 = scalar_select %p40, %s41, %s42
      %p46 = pneg %p40
      %p47 = scmp.eq.s32.totalorder %s17, 1
      %p48 = por %p46, %p47
      %p49 = scmp.ne.s32.totalorder %s41, %s44
      %p50 = scmp.eq.s32.totalorder %s17, 0
      %p51 = por %p49, %p50
      %p52 = scmp.ne.s32.totalorder %s41, %s44
      %p53 = scmp.eq.s32.totalorder %s22, 1
      %p54 = por %p52, %p53
      %p55 = scmp.ne.s32.totalorder %s44, %s45
      %p56 = scmp.eq.s32.totalorder %s22, 0
      %p57 = por %p55, %p56
      %p58 = scmp.ne.s32.totalorder %s44, %s45
      %p59 = scmp.eq.s32.totalorder %s23, 1
      %p60 = por %p58, %p59
      %p62 = scmp.ne.s32.totalorder %s45, %s61
      %p63 = scmp.eq.s32.totalorder %s23, 0
      %p64 = por %p62, %p63
      %s65 = ssub.s32 %s24, %s36
      %s66 = ssub.s32 %s25, %s32
      %s67 = sor.u32 %s65, %s66
      %p68 = scmp.eq.s32.totalorder %s67, 0
      %s70 = sadd.s32 %s69, 1
      %s71 = scalar_select %p68, %s69, %s70
      %p74 = pneg %p68
      %p75 = scmp.eq.s32.totalorder %s17, 1
      %p76 = por %p74, %p75
      %p77 = scmp.ne.s32.totalorder %s69, %s72
      %p78 = scmp.eq.s32.totalorder %s17, 0
      %p79 = por %p77, %p78
      %p80 = scmp.ne.s32.totalorder %s69, %s72
      %p81 = scmp.eq.s32.totalorder %s22, 1
      %p82 = por %p80, %p81
      %p83 = scmp.ne.s32.totalorder %s72, %s73
      %p84 = scmp.eq.s32.totalorder %s22, 0
      %p85 = por %p83, %p84
      %p86 = scmp.ne.s32.totalorder %s72, %s73
      %p87 = scmp.eq.s32.totalorder %s23, 1
      %p88 = por %p86, %p87
      %p90 = scmp.ne.s32.totalorder %s73, %s89
      %p91 = scmp.eq.s32.totalorder %s23, 0
      %p92 = por %p90, %p91
      %s93 = ssub.s32 %s24, %s36
      %s94 = ssub.s32 %s25, %s32
      %s95 = sor.u32 %s93, %s94
      %p96 = scmp.eq.s32.totalorder %s95, 0
      %s98 = sadd.s32 %s97, 1
      %s99 = scalar_select %p96, %s97, %s98
      %p102 = pneg %p96
      %p103 = scmp.eq.s32.totalorder %s17, 1
      %p104 = por %p102, %p103
      %p105 = scmp.ne.s32.totalorder %s97, %s100
      %p106 = scmp.eq.s32.totalorder %s17, 0
      %p107 = por %p105, %p106
      %p108 = scmp.ne.s32.totalorder %s97, %s100
      %p109 = scmp.eq.s32.totalorder %s22, 1
      %p110 = por %p108, %p109
      %p111 = scmp.ne.s32.totalorder %s100, %s101
      %p112 = scmp.eq.s32.totalorder %s22, 0
      %p113 = por %p111, %p112
      %p114 = scmp.ne.s32.totalorder %s100, %s101
      %p115 = scmp.eq.s32.totalorder %s23, 1
      %p116 = por %p114, %p115
      %p118 = scmp.ne.s32.totalorder %s101, %s117
      %p119 = scmp.eq.s32.totalorder %s23, 0
      %p120 = por %p118, %p119
      %p121 = scmp.le.s32.totalorder 1, %s17
      %p122 = scmp.lt.s32.totalorder %s17, 3
      %p123 = pnand %p121, %p122
      %p124 = pneg %p123
      // Predicated region
      $region9: #{tpu_custom_call.1} parent=5 // pred_check
        _
      $region10: #{tpu_custom_call.1} parent=5 // pred_check_branch
        %126 = sbr.rel (%p123) target = $region12
      $region11: #{tpu_custom_call.1} parent=5 // pred_region
        %s127 = ssub.s32 %s17, 1
      $region12: #{tpu_custom_call.1} parent=5 // pred_fallthru
        _
      %p128 = scmp.lt.s32.totalorder %s17, 2
      // Predicated region
      $region13: #{tpu_custom_call.1} parent=5 // pred_check
        %p129 = pneg %p128
      $region14: #{tpu_custom_call.1} parent=5 // pred_check_branch
        %131 = sbr.rel (%p129) target = $region16
      $region15: #{tpu_custom_call.1} parent=5 // pred_region
        // Predicated region
        $region17: #{tpu_custom_call.1} parent=15 // pred_check
          %p132 = pneg %p51
        $region18: #{tpu_custom_call.1} parent=15 // pred_check_branch
          %134 = sbr.rel (%p132) target = $region20
        $region19: #{tpu_custom_call.1} parent=15 // pred_region
          %s135 = sand.u32 %s41, 1
          %s136 = scalar_lea.sflag [#allocation3], %s135
          %s137 = sand.u32 %s41, 1
          %s138 = smul.addr %s137, 8
          %s139 = scalar_lea.vmem [#allocation2], %s138
          %s140 = smul.u32 2, %s25
          %142 = vsyncadd %s136, 0
          %s143 = smul.addr %s24, 2
          %s144 = sadd.s32 %s140, %s143
          %s145 = smul.addr %s144, 4
          %s146 = scalar_lea.hbm %s0, %s145
          %s148 = sshll.u32 %s146, 4
          %s149 = int_to_ptr.hbm [resolvable:$true] %s148
          %s150 = sshll.u32 %s139, 4
          %s151 = int_to_ptr.vmem [resolvable:$true] %s150
          %153 = dma.hbm_to_vmem [thread:$0]  %s149, 128, %s151, %s136
        $region20: #{tpu_custom_call.1} parent=15 // pred_fallthru
          _
        // Predicated region
        $region21: #{tpu_custom_call.1} parent=15 // pred_check
          %p154 = pneg %p79
        $region22: #{tpu_custom_call.1} parent=15 // pred_check_branch
          %156 = sbr.rel (%p154) target = $region24
        $region23: #{tpu_custom_call.1} parent=15 // pred_region
          %s157 = sand.u32 %s69, 1
          %s158 = scalar_lea.sflag [#allocation6], %s157
          %s159 = sand.u32 %s69, 1
          %s160 = smul.addr %s159, 8
          %s161 = scalar_lea.vmem [#allocation5], %s160
          %s162 = smul.u32 2, %s25
          %164 = vsyncadd %s158, 0
          %s165 = smul.addr %s24, 2
          %s166 = sadd.s32 %s162, %s165
          %s167 = smul.addr %s166, 4
          %s168 = scalar_lea.hbm %s1, %s167
          %s170 = sshll.u32 %s168, 4
          %s171 = int_to_ptr.hbm [resolvable:$true] %s170
          %s172 = sshll.u32 %s161, 4
          %s173 = int_to_ptr.vmem [resolvable:$true] %s172
          %175 = dma.hbm_to_vmem [thread:$0]  %s171, 128, %s173, %s158
        $region24: #{tpu_custom_call.1} parent=15 // pred_fallthru
          _
      $region16: #{tpu_custom_call.1} parent=5 // pred_fallthru
        _
      %p176 = scmp.le.s32.totalorder 1, %s17
      %p177 = scmp.lt.s32.totalorder %s17, 3
      %p178 = pnand %p176, %p177
      %p179 = pneg %p178
      // Predicated region
      $region25: #{tpu_custom_call.1} parent=5 // pred_check
        _
      $region26: #{tpu_custom_call.1} parent=5 // pred_check_branch
        %181 = sbr.rel (%p178) target = $region28
      $region27: #{tpu_custom_call.1} parent=5 // pred_region
        %s182 = ssub.s32 %s17, 1
        %s183 = sand.u32 %s44, 1
        %s184 = scalar_lea.sflag [#allocation3], %s183
        %s185 = sand.u32 %s44, 1
        %s186 = smul.addr %s185, 8
        %s187 = scalar_lea.vmem [#allocation2], %s186
        // Predicated region
        $region29: #{tpu_custom_call.1} parent=27 // pred_check
          %p188 = pneg %p57
        $region30: #{tpu_custom_call.1} parent=27 // pred_check_branch
          %190 = sbr.rel (%p188) target = $region32
        $region31: #{tpu_custom_call.1} parent=27 // pred_region
          %192 = dma.done %s184, 128
        $region32: #{tpu_custom_call.1} parent=27 // pred_fallthru
          _
        %s193 = sand.u32 %s72, 1
        %s194 = scalar_lea.sflag [#allocation6], %s193
        %s195 = sand.u32 %s72, 1
        %s196 = smul.addr %s195, 8
        %s197 = scalar_lea.vmem [#allocation5], %s196
        // Predicated region
        $region33: #{tpu_custom_call.1} parent=27 // pred_check
          %p198 = pneg %p85
        $region34: #{tpu_custom_call.1} parent=27 // pred_check_branch
          %200 = sbr.rel (%p198) target = $region36
        $region35: #{tpu_custom_call.1} parent=27 // pred_region
          %202 = dma.done %s194, 128
        $region36: #{tpu_custom_call.1} parent=27 // pred_fallthru
          _
        %s203 = sand.u32 %s44, 1
        %s204 = scalar_lea.sflag [#allocation3], %s203
        %s205 = sand.u32 %s44, 1
        %s206 = smul.addr %s205, 8
        %s207 = scalar_lea.vmem [#allocation2], %s206
        %p208 = pneg %p57
        %p209 = pneg %p54
        %s210 = sand.u32 %s72, 1
        %s211 = scalar_lea.sflag [#allocation6], %s210
        %s212 = sand.u32 %s72, 1
        %s213 = smul.addr %s212, 8
        %s214 = scalar_lea.vmem [#allocation5], %s213
        %p215 = pneg %p85
        %p216 = pneg %p82
        %p217 = pneg %p113
        %p218 = pneg %p110
        %s219 = sand.u32 %s100, 1
        %s220 = scalar_lea.sflag [#allocation4], %s219
        %s221 = sand.u32 %s100, 1
        %s222 = smul.addr %s221, 2
        %s223 = scalar_lea.vmem [#allocation7], %s222
        %s224 = smul.u32 2, %s27
        %s225 = smul.u32 2, %s27
        %s226 = smul.u32 2, %s27
        %v227 = vld [vmem:[%s187] sm:$0xff]
        %v228 = vld [vmem:[%s197] sm:$0xff]
        %v229 = vmul.f32 %v227, %v228
        %231 = vst [vmem:[#allocation1] ss:$2 sm:$0xff] %v229
        %v232 = vld.sshfl [vmem:[#allocation1] sm:$0xff pattern:$0x75316420]
        %v233 = vld.sshfl [vmem:[#allocation1 + $0x8] sm:$0xff pattern:$0x75316420]
        %vm236 = vcmask 1043456
        %v237 = vsel %vm236, %v232, 0.0
        %v238 = vrot.slane %v237, 4
        %v239 = vadd.f32 %v237, %v238
        %v240 = vrot.slane %v239, 2
        %v241 = vadd.f32 %v239, %v240
        %v242 = vrot.slane %v241, 1
        %v243 = vadd.f32 %v241, %v242
        %v244 = vsel %vm236, %v233, 0.0
        %v245 = vrot.slane %v244, 4
        %v246 = vadd.f32 %v244, %v245
        %v247 = vrot.slane %v246, 2
        %v248 = vadd.f32 %v246, %v247
        %v249 = vrot.slane %v248, 1
        %v250 = vadd.f32 %v248, %v249
        %v251 = vmul.f32 %v227, %v227
        %253 = vst [vmem:[#allocation1] ss:$2 sm:$0xff] %v251
        %v254 = vld.sshfl [vmem:[#allocation1] sm:$0xff pattern:$0x75316420]
        %v255 = vld.sshfl [vmem:[#allocation1 + $0x8] sm:$0xff pattern:$0x75316420]
        %v258 = vsel %vm236, %v254, 0.0
        %v259 = vrot.slane %v258, 4
        %v260 = vadd.f32 %v258, %v259
        %v261 = vrot.slane %v260, 2
        %v262 = vadd.f32 %v260, %v261
        %v263 = vrot.slane %v262, 1
        %v264 = vadd.f32 %v262, %v263
        %v265 = vsel %vm236, %v255, 0.0
        %v266 = vrot.slane %v265, 4
        %v267 = vadd.f32 %v265, %v266
        %v268 = vrot.slane %v267, 2
        %v269 = vadd.f32 %v267, %v268
        %v270 = vrot.slane %v269, 1
        %v271 = vadd.f32 %v269, %v270
        %v272 = vmul.f32 %v228, %v228
        %274 = vst [vmem:[#allocation1] ss:$2 sm:$0xff] %v272
        %v275 = vld.sshfl [vmem:[#allocation1] sm:$0xff pattern:$0x75316420]
        %v276 = vld.sshfl [vmem:[#allocation1 + $0x8] sm:$0xff pattern:$0x75316420]
        %v279 = vsel %vm236, %v275, 0.0
        %v280 = vrot.slane %v279, 4
        %v281 = vadd.f32 %v279, %v280
        %v282 = vrot.slane %v281, 2
        %v283 = vadd.f32 %v281, %v282
        %v284 = vrot.slane %v283, 1
        %v285 = vadd.f32 %v283, %v284
        %v286 = vsel %vm236, %v276, 0.0
        %v287 = vrot.slane %v286, 4
        %v288 = vadd.f32 %v286, %v287
        %v289 = vrot.slane %v288, 2
        %v290 = vadd.f32 %v288, %v289
        %v291 = vrot.slane %v290, 1
        %v292 = vadd.f32 %v290, %v291
        %v293 = vmul.f32 %v264, %v285
        %v294 = vmul.f32 %v271, %v292
        %v295 = vmax.f32 %v293, 1e-16
        %v296 = vmax.f32 %v294, 1e-16
        %v297 = vrsqrt.pop %v295
        %v298 = vmul.f32 %v297, %v295
        %v299 = vmul.f32 %v298, %v297
        %v300 = vmul.f32 0.5, %v299
        %v301 = vsub.f32 1.5, %v300
        %v302 = vmul.f32 %v297, %v301
        %vm303 = vweird.f32 %v295
        %vm304 = vweird.f32 %v297
        %vm305 = vmor %vm303, %vm304
        %v306 = vsel %vm305, %v297, %v302
        %v307 = vrsqrt.pop %v296
        %v308 = vmul.f32 %v307, %v296
        %v309 = vmul.f32 %v308, %v307
        %v310 = vmul.f32 0.5, %v309
        %v311 = vsub.f32 1.5, %v310
        %v312 = vmul.f32 %v307, %v311
        %vm313 = vweird.f32 %v296
        %vm314 = vweird.f32 %v307
        %vm315 = vmor %vm313, %vm314
        %v316 = vsel %vm315, %v307, %v312
        %v317 = vmul.f32 %v243, %v306
        %v318 = vmul.f32 %v250, %v316
        %v319 = vsub.f32 1.0, %v317
        %v320 = vsub.f32 1.0, %v318
        %v323 = vrot.slane %v320, 7
        %vm324 = vcmask 1040384
        %v325 = vsel %vm324, %v319, %v323
        %v327 = vlaneseq
        %vm328 = vcmp.ge.s32.totalorder %v327, 0
        %vm329 = vcmp.lt.s32.totalorder %v327, 256
        %vm330 = vmand %vm328, %vm329
        %331 = vst.msk [vmem:[%s223] sm:$0x3] %vm330, %v325
        %s332 = sand.u32 %s100, 1
        %s333 = scalar_lea.sflag [#allocation4], %s332
        %s334 = sand.u32 %s100, 1
        %s335 = smul.addr %s334, 2
        %s336 = scalar_lea.vmem [#allocation7], %s335
        // Predicated region
        $region37: #{tpu_custom_call.1} parent=27 // pred_check
          %p337 = pneg %p110
        $region38: #{tpu_custom_call.1} parent=27 // pred_check_branch
          %339 = sbr.rel (%p337) target = $region40
        $region39: #{tpu_custom_call.1} parent=27 // pred_region
          %s340 = smul.u32 2, %s27
          %342 = vsyncadd %s333, 0
          %s343 = smul.addr %s26, 2
          %s344 = sadd.s32 %s340, %s343
          %s345 = scalar_lea.hbm %s2, %s344
          %s347 = sshll.u32 %s336, 4
          %s348 = int_to_ptr.vmem [resolvable:$true] %s347
          %s349 = sshll.u32 %s345, 4
          %s350 = int_to_ptr.hbm [resolvable:$true] %s349
          %352 = dma.vmem_to_hbm [thread:$0]  %s348, 32, %s350, %s333
        $region40: #{tpu_custom_call.1} parent=27 // pred_fallthru
          _
      $region28: #{tpu_custom_call.1} parent=5 // pred_fallthru
        _
      %p353 = scmp.le.s32.totalorder 2, %s17
      // Predicated region
      $region41: #{tpu_custom_call.1} parent=5 // pred_check
        %p354 = pneg %p353
      $region42: #{tpu_custom_call.1} parent=5 // pred_check_branch
        %356 = sbr.rel (%p354) target = $region44
      $region43: #{tpu_custom_call.1} parent=5 // pred_region
        %s357 = ssub.s32 %s17, 2
        // Predicated region
        $region45: #{tpu_custom_call.1} parent=43 // pred_check
          %p358 = pneg %p116
        $region46: #{tpu_custom_call.1} parent=43 // pred_check_branch
          %360 = sbr.rel (%p358) target = $region48
        $region47: #{tpu_custom_call.1} parent=43 // pred_region
          %s361 = sand.u32 %s101, 1
          %s362 = scalar_lea.sflag [#allocation4], %s361
          %s363 = sand.u32 %s101, 1
          %s364 = smul.addr %s363, 2
          %s365 = scalar_lea.vmem [#allocation7], %s364
          %367 = dma.done %s362, 32
        $region48: #{tpu_custom_call.1} parent=43 // pred_fallthru
          _
      $region44: #{tpu_custom_call.1} parent=5 // pred_fallthru
        _
    $region6: #{tpu_custom_call.1} parent=1 // loop_footer
      %s21 = sadd.s32 1, %s17
    $region7: #{tpu_custom_call.1} parent=1 // loop_footer_branch
      %16 = sbr.rel target = $region3
    $region8: #{tpu_custom_call.1} parent=1 // loop_exit
      _
    %368 = vsyncpa [#allocation3], 1
    %s369 = scalar_lea.sflag [#allocation3], 1
    %370 = vsyncpa %s369, 1
    %371 = vsyncpa [#allocation6], 1
    %s372 = scalar_lea.sflag [#allocation6], 1
    %373 = vsyncpa %s372, 1
    %374 = vsyncpa [#allocation4], 1
    %s375 = scalar_lea.sflag [#allocation4], 1
    %376 = vsyncpa %s375, 1

</llo_original>
